<compile_context>
chip_gen: v5e
topology: v5e:2x2
jax: 0.10.0
libtpu: 0.0.40
codegen_flags: <defaults>
</compile_context>

<pallas_src>
import jax
import jax.numpy as jnp
from jax.experimental import pallas as pl
from jax.experimental.pallas import tpu as pltpu  # noqa: F401  (not needed at this size)


# ----------------------------------------------------------------------------
# Pallas kernel: full bidirectional-LSTM-for-last-timestep + fc head, one call.
# ----------------------------------------------------------------------------
def _bilstm_fc_kernel(
    x_ref,                      # (T*B, I)  time-major rows: row t*B + b = (t, b)
    wih_f_ref, whh_f_ref, b_f_ref,   # (I, 4H), (H, 4H), (1, 4H)   forward dir
    wih_b_ref, b_b_ref,              # (I, 4H), (1, 4H)            backward dir (1 step)
    wfc_ref, bfc_ref,                # (1, 2H), (1, 1)             fc head
    out_ref,                         # (B, 1)
):
    B = out_ref.shape[0]
    H = whh_f_ref.shape[0]
    TB = x_ref.shape[0]
    T = TB // B

    x2d = x_ref[...]
    whh_f = whh_f_ref[...]

    # Hoisted input projection: one MXU pass covers every forward timestep.
    xg_f = (jnp.dot(x2d, wih_f_ref[...], preferred_element_type=jnp.float32)
            + b_f_ref[...])                                   # (T*B, 4H)

    def gates_to_ifgo(gates):                                 # PyTorch order i, f, g, o
        i_g = jax.nn.sigmoid(gates[:, 0 * H:1 * H])
        f_g = jax.nn.sigmoid(gates[:, 1 * H:2 * H])
        g_g = jnp.tanh(gates[:, 2 * H:3 * H])
        o_g = jax.nn.sigmoid(gates[:, 3 * H:4 * H])
        return i_g, f_g, g_g, o_g

    # ---- forward recurrence, fully unrolled (T is static & tiny) ----
    # t = 0: h0 = c0 = 0, so the recurrent matmul and the f*c term vanish.
    i_g, _, g_g, o_g = gates_to_ifgo(xg_f[0:B, :])
    c = i_g * g_g
    h = o_g * jnp.tanh(c)
    for t in range(1, T):
        gates = xg_f[t * B:(t + 1) * B, :] + jnp.dot(
            h, whh_f, preferred_element_type=jnp.float32)
        i_g, f_g, g_g, o_g = gates_to_ifgo(gates)
        c = f_g * c + i_g * g_g
        h = o_g * jnp.tanh(c)

    # ---- backward direction: only its first step (on x[T-1]) reaches the head ----
    # h0 = c0 = 0  =>  no h @ W_hh_b matmul, c_b = i*g.
    gates_b = (jnp.dot(x2d[(T - 1) * B:T * B, :], wih_b_ref[...],
                       preferred_element_type=jnp.float32) + b_b_ref[...])
    i_b, _, g_b, o_b = gates_to_ifgo(gates_b)
    c_b = i_b * g_b
    h_b = o_b * jnp.tanh(c_b)

    # ---- fc head: VPU multiply + lane reduce (no 1-lane-wide MXU result) ----
    wfc = wfc_ref[...]                                        # (1, 2H)
    out_ref[...] = (jnp.sum(h * wfc[:, :H], axis=-1, keepdims=True)
                    + jnp.sum(h_b * wfc[:, H:], axis=-1, keepdims=True)
                    + bfc_ref[...])


def bilstm_fc_forward(x, params, gt=None):
    """Mirrors LSTMModel.forward.  x: (B, T, I)."""
    x = x.astype(jnp.float32)
    B, T, I = x.shape

    # Time-major flatten (layout plumbing only): row t*B + b  ==  (timestep t, batch b).
    x_2d = jnp.transpose(x, (1, 0, 2)).reshape(T * B, I)

    out = pl.pallas_call(
        _bilstm_fc_kernel,
        out_shape=jax.ShapeDtypeStruct((B, 1), jnp.float32),
    )(
        x_2d,
        params["wih_fT"], params["whh_fT"], params["b_f"],
        params["wih_bT"], params["b_b"],
        params["wfc"], params["bfc"],
    )

    if gt is not None:
        loss = jnp.mean((out - gt) ** 2)
        return out, loss
    return out


# ----------------------------------------------------------------------------
# Pure-JAX reference: full bidirectional nn.LSTM + fc on lstm_out[:, -1, :].
# ----------------------------------------------------------------------------
def _ref_forward(x, params):
    x = x.astype(jnp.float32)
    B, T, I = x.shape
    H = params["whh_fT"].shape[0]

    def make_step(wih, whh, b):
        def step(carry, x_t):
            h, c = carry
            g = x_t @ wih + h @ whh + b
            i_g = jax.nn.sigmoid(g[:, :H])
            f_g = jax.nn.sigmoid(g[:, H:2 * H])
            g_g = jnp.tanh(g[:, 2 * H:3 * H])
            o_g = jax.nn.sigmoid(g[:, 3 * H:])
            c = f_g * c + i_g * g_g
            h = o_g * jnp.tanh(c)
            return (h, c), h
        return step

    h0 = jnp.zeros((B, H), jnp.float32)
    c0 = jnp.zeros((B, H), jnp.float32)
    x_tm = jnp.transpose(x, (1, 0, 2))                        # (T, B, I)

    _, hs_f = jax.lax.scan(
        make_step(params["wih_fT"], params["whh_fT"], params["b_f"]), (h0, c0), x_tm)
    _, hs_b_rev = jax.lax.scan(
        make_step(params["wih_bT"], params["whh_bT"], params["b_b"]), (h0, c0),
        x_tm[::-1])
    hs_b = hs_b_rev[::-1]                                     # back to original order

    last = jnp.concatenate([hs_f[-1], hs_b[-1]], axis=-1)     # lstm_out[:, -1, :]
    return last @ params["wfc"].T + params["bfc"]


# ----------------------------------------------------------------------------
# Deterministic parameter init (PyTorch-style uniform(-1/sqrt(fan), 1/sqrt(fan))).
# ----------------------------------------------------------------------------
def init_params(key, input_size, hidden_size):
    H, I = hidden_size, input_size
    k_lstm = 1.0 / jnp.sqrt(H)
    keys = jax.random.split(key, 10)
    u = lambda k, shape, bound: jax.random.uniform(
        k, shape, jnp.float32, minval=-bound, maxval=bound)

    params = {}
    for d, off in (("f", 0), ("b", 4)):
        w_ih = u(keys[off + 0], (4 * H, I), k_lstm)
        w_hh = u(keys[off + 1], (4 * H, H), k_lstm)
        b_ih = u(keys[off + 2], (4 * H,), k_lstm)
        b_hh = u(keys[off + 3], (4 * H,), k_lstm)
        params[f"wih_{d}T"] = w_ih.T                      # (I, 4H)
        params[f"whh_{d}T"] = w_hh.T                      # (H, 4H)
        params[f"b_{d}"] = (b_ih + b_hh)[None, :]         # (1, 4H)

    k_fc = 1.0 / jnp.sqrt(2 * H)
    params["wfc"] = u(keys[8], (1, 2 * H), k_fc)          # (1, 2H)
    params["bfc"] = u(keys[9], (1,), k_fc)[None, :]       # (1, 1)
    return params


if __name__ == "__main__":
    B, T, I, H = 2, 8, 16, 32   # batch, seq_len, input_size, hidden_size

    key = jax.random.PRNGKey(0)
    k_x, k_p = jax.random.split(key)
    x = jax.random.normal(k_x, (B, T, I), jnp.float32)
    params = init_params(k_p, I, H)

    out = jax.block_until_ready(bilstm_fc_forward(x, params))

    ref = _ref_forward(x, params)
    assert out.shape == (B, 1), out.shape
    assert jnp.allclose(out, ref, atol=1e-5, rtol=1e-5), (out, ref)

    print("KERNEL_OK")
</pallas_src>

<mosaic_0001>
module attributes {stable_mosaic.version = 11 : i64} {
  func.func @_bilstm_fc_kernel(%arg0: memref<16x16xf32, #tpu.memory_space<vmem>>, %arg1: memref<16x128xf32, #tpu.memory_space<vmem>>, %arg2: memref<32x128xf32, #tpu.memory_space<vmem>>, %arg3: memref<1x128xf32, #tpu.memory_space<vmem>>, %arg4: memref<16x128xf32, #tpu.memory_space<vmem>>, %arg5: memref<1x128xf32, #tpu.memory_space<vmem>>, %arg6: memref<1x64xf32, #tpu.memory_space<vmem>>, %arg7: memref<1x1xf32, #tpu.memory_space<vmem>>, %arg8: memref<2x1xf32, #tpu.memory_space<vmem>>) attributes {dimension_semantics = [], scalar_prefetch = 0 : i64, scratch_operands = 0 : i64, tpu.core_type = #tpu.core_type<tc>} {
    %c0 = arith.constant 0 : index
    %c0_0 = arith.constant 0 : index
    %0 = vector.load %arg0[%c0, %c0_0] : memref<16x16xf32, #tpu.memory_space<vmem>>, vector<16x16xf32>
    %c0_1 = arith.constant 0 : index
    %c0_2 = arith.constant 0 : index
    %1 = vector.load %arg2[%c0_1, %c0_2] : memref<32x128xf32, #tpu.memory_space<vmem>>, vector<32x128xf32>
    %c0_3 = arith.constant 0 : index
    %c0_4 = arith.constant 0 : index
    %2 = vector.load %arg1[%c0_3, %c0_4] : memref<16x128xf32, #tpu.memory_space<vmem>>, vector<16x128xf32>
    %cst = arith.constant dense<0.000000e+00> : vector<16x128xf32>
    %3 = tpu.matmul %0, %2, %cst {dimension_numbers = #tpu.dot_dimension_numbers<[1], [0], [0], [1], [0, 0, 1, 1], [], []>} : vector<16x16xf32>, vector<16x128xf32>, vector<16x128xf32> -> vector<16x128xf32>
    %c0_5 = arith.constant 0 : index
    %c0_6 = arith.constant 0 : index
    %4 = vector.load %arg3[%c0_5, %c0_6] : memref<1x128xf32, #tpu.memory_space<vmem>>, vector<1x128xf32>
    %5 = vector.broadcast %4 : vector<1x128xf32> to vector<16x128xf32>
    %6 = arith.addf %3, %5 : vector<16x128xf32>
    %7 = vector.extract_strided_slice %6 {offsets = [0, 0], sizes = [2, 128], strides = [1, 1]} : vector<16x128xf32> to vector<2x128xf32>
    %8 = vector.extract_strided_slice %7 {offsets = [0, 0], sizes = [2, 32], strides = [1, 1]} : vector<2x128xf32> to vector<2x32xf32>
    %9 = arith.negf %8 : vector<2x32xf32>
    %10 = math.exp %9 : vector<2x32xf32>
    %cst_7 = arith.constant 1.000000e+00 : f32
    %11 = vector.broadcast %cst_7 : f32 to vector<2x32xf32>
    %12 = arith.addf %11, %10 : vector<2x32xf32>
    %13 = arith.divf %11, %12 : vector<2x32xf32>
    %14 = vector.extract_strided_slice %7 {offsets = [0, 64], sizes = [2, 32], strides = [1, 1]} : vector<2x128xf32> to vector<2x32xf32>
    %15 = math.tanh %14 : vector<2x32xf32>
    %16 = vector.extract_strided_slice %7 {offsets = [0, 96], sizes = [2, 32], strides = [1, 1]} : vector<2x128xf32> to vector<2x32xf32>
    %17 = arith.negf %16 : vector<2x32xf32>
    %18 = math.exp %17 : vector<2x32xf32>
    %cst_8 = arith.constant 1.000000e+00 : f32
    %19 = vector.broadcast %cst_8 : f32 to vector<2x32xf32>
    %20 = arith.addf %19, %18 : vector<2x32xf32>
    %21 = arith.divf %19, %20 : vector<2x32xf32>
    %22 = arith.mulf %13, %15 : vector<2x32xf32>
    %23 = math.tanh %22 : vector<2x32xf32>
    %24 = arith.mulf %21, %23 : vector<2x32xf32>
    %25 = vector.extract_strided_slice %6 {offsets = [2, 0], sizes = [2, 128], strides = [1, 1]} : vector<16x128xf32> to vector<2x128xf32>
    %cst_9 = arith.constant dense<0.000000e+00> : vector<2x128xf32>
    %26 = tpu.matmul %24, %1, %cst_9 {dimension_numbers = #tpu.dot_dimension_numbers<[1], [0], [0], [1], [0, 0, 1, 1], [], []>} : vector<2x32xf32>, vector<32x128xf32>, vector<2x128xf32> -> vector<2x128xf32>
    %27 = arith.addf %25, %26 : vector<2x128xf32>
    %28 = vector.extract_strided_slice %27 {offsets = [0, 0], sizes = [2, 32], strides = [1, 1]} : vector<2x128xf32> to vector<2x32xf32>
    %29 = arith.negf %28 : vector<2x32xf32>
    %30 = math.exp %29 : vector<2x32xf32>
    %cst_10 = arith.constant 1.000000e+00 : f32
    %31 = vector.broadcast %cst_10 : f32 to vector<2x32xf32>
    %32 = arith.addf %31, %30 : vector<2x32xf32>
    %33 = arith.divf %31, %32 : vector<2x32xf32>
    %34 = vector.extract_strided_slice %27 {offsets = [0, 32], sizes = [2, 32], strides = [1, 1]} : vector<2x128xf32> to vector<2x32xf32>
    %35 = arith.negf %34 : vector<2x32xf32>
    %36 = math.exp %35 : vector<2x32xf32>
    %cst_11 = arith.constant 1.000000e+00 : f32
    %37 = vector.broadcast %cst_11 : f32 to vector<2x32xf32>
    %38 = arith.addf %37, %36 : vector<2x32xf32>
    %39 = arith.divf %37, %38 : vector<2x32xf32>
    %40 = vector.extract_strided_slice %27 {offsets = [0, 64], sizes = [2, 32], strides = [1, 1]} : vector<2x128xf32> to vector<2x32xf32>
    %41 = math.tanh %40 : vector<2x32xf32>
    %42 = vector.extract_strided_slice %27 {offsets = [0, 96], sizes = [2, 32], strides = [1, 1]} : vector<2x128xf32> to vector<2x32xf32>
    %43 = arith.negf %42 : vector<2x32xf32>
    %44 = math.exp %43 : vector<2x32xf32>
    %cst_12 = arith.constant 1.000000e+00 : f32
    %45 = vector.broadcast %cst_12 : f32 to vector<2x32xf32>
    %46 = arith.addf %45, %44 : vector<2x32xf32>
    %47 = arith.divf %45, %46 : vector<2x32xf32>
    %48 = arith.mulf %39, %22 : vector<2x32xf32>
    %49 = arith.mulf %33, %41 : vector<2x32xf32>
    %50 = arith.addf %48, %49 : vector<2x32xf32>
    %51 = math.tanh %50 : vector<2x32xf32>
    %52 = arith.mulf %47, %51 : vector<2x32xf32>
    %53 = vector.extract_strided_slice %6 {offsets = [4, 0], sizes = [2, 128], strides = [1, 1]} : vector<16x128xf32> to vector<2x128xf32>
    %cst_13 = arith.constant dense<0.000000e+00> : vector<2x128xf32>
    %54 = tpu.matmul %52, %1, %cst_13 {dimension_numbers = #tpu.dot_dimension_numbers<[1], [0], [0], [1], [0, 0, 1, 1], [], []>} : vector<2x32xf32>, vector<32x128xf32>, vector<2x128xf32> -> vector<2x128xf32>
    %55 = arith.addf %53, %54 : vector<2x128xf32>
    %56 = vector.extract_strided_slice %55 {offsets = [0, 0], sizes = [2, 32], strides = [1, 1]} : vector<2x128xf32> to vector<2x32xf32>
    %57 = arith.negf %56 : vector<2x32xf32>
    %58 = math.exp %57 : vector<2x32xf32>
    %cst_14 = arith.constant 1.000000e+00 : f32
    %59 = vector.broadcast %cst_14 : f32 to vector<2x32xf32>
    %60 = arith.addf %59, %58 : vector<2x32xf32>
    %61 = arith.divf %59, %60 : vector<2x32xf32>
    %62 = vector.extract_strided_slice %55 {offsets = [0, 32], sizes = [2, 32], strides = [1, 1]} : vector<2x128xf32> to vector<2x32xf32>
    %63 = arith.negf %62 : vector<2x32xf32>
    %64 = math.exp %63 : vector<2x32xf32>
    %cst_15 = arith.constant 1.000000e+00 : f32
    %65 = vector.broadcast %cst_15 : f32 to vector<2x32xf32>
    %66 = arith.addf %65, %64 : vector<2x32xf32>
    %67 = arith.divf %65, %66 : vector<2x32xf32>
    %68 = vector.extract_strided_slice %55 {offsets = [0, 64], sizes = [2, 32], strides = [1, 1]} : vector<2x128xf32> to vector<2x32xf32>
    %69 = math.tanh %68 : vector<2x32xf32>
    %70 = vector.extract_strided_slice %55 {offsets = [0, 96], sizes = [2, 32], strides = [1, 1]} : vector<2x128xf32> to vector<2x32xf32>
    %71 = arith.negf %70 : vector<2x32xf32>
    %72 = math.exp %71 : vector<2x32xf32>
    %cst_16 = arith.constant 1.000000e+00 : f32
    %73 = vector.broadcast %cst_16 : f32 to vector<2x32xf32>
    %74 = arith.addf %73, %72 : vector<2x32xf32>
    %75 = arith.divf %73, %74 : vector<2x32xf32>
    %76 = arith.mulf %67, %50 : vector<2x32xf32>
    %77 = arith.mulf %61, %69 : vector<2x32xf32>
    %78 = arith.addf %76, %77 : vector<2x32xf32>
    %79 = math.tanh %78 : vector<2x32xf32>
    %80 = arith.mulf %75, %79 : vector<2x32xf32>
    %81 = vector.extract_strided_slice %6 {offsets = [6, 0], sizes = [2, 128], strides = [1, 1]} : vector<16x128xf32> to vector<2x128xf32>
    %cst_17 = arith.constant dense<0.000000e+00> : vector<2x128xf32>
    %82 = tpu.matmul %80, %1, %cst_17 {dimension_numbers = #tpu.dot_dimension_numbers<[1], [0], [0], [1], [0, 0, 1, 1], [], []>} : vector<2x32xf32>, vector<32x128xf32>, vector<2x128xf32> -> vector<2x128xf32>
    %83 = arith.addf %81, %82 : vector<2x128xf32>
    %84 = vector.extract_strided_slice %83 {offsets = [0, 0], sizes = [2, 32], strides = [1, 1]} : vector<2x128xf32> to vector<2x32xf32>
    %85 = arith.negf %84 : vector<2x32xf32>
    %86 = math.exp %85 : vector<2x32xf32>
    %cst_18 = arith.constant 1.000000e+00 : f32
    %87 = vector.broadcast %cst_18 : f32 to vector<2x32xf32>
    %88 = arith.addf %87, %86 : vector<2x32xf32>
    %89 = arith.divf %87, %88 : vector<2x32xf32>
    %90 = vector.extract_strided_slice %83 {offsets = [0, 32], sizes = [2, 32], strides = [1, 1]} : vector<2x128xf32> to vector<2x32xf32>
    %91 = arith.negf %90 : vector<2x32xf32>
    %92 = math.exp %91 : vector<2x32xf32>
    %cst_19 = arith.constant 1.000000e+00 : f32
    %93 = vector.broadcast %cst_19 : f32 to vector<2x32xf32>
    %94 = arith.addf %93, %92 : vector<2x32xf32>
    %95 = arith.divf %93, %94 : vector<2x32xf32>
    %96 = vector.extract_strided_slice %83 {offsets = [0, 64], sizes = [2, 32], strides = [1, 1]} : vector<2x128xf32> to vector<2x32xf32>
    %97 = math.tanh %96 : vector<2x32xf32>
    %98 = vector.extract_strided_slice %83 {offsets = [0, 96], sizes = [2, 32], strides = [1, 1]} : vector<2x128xf32> to vector<2x32xf32>
    %99 = arith.negf %98 : vector<2x32xf32>
    %100 = math.exp %99 : vector<2x32xf32>
    %cst_20 = arith.constant 1.000000e+00 : f32
    %101 = vector.broadcast %cst_20 : f32 to vector<2x32xf32>
    %102 = arith.addf %101, %100 : vector<2x32xf32>
    %103 = arith.divf %101, %102 : vector<2x32xf32>
    %104 = arith.mulf %95, %78 : vector<2x32xf32>
    %105 = arith.mulf %89, %97 : vector<2x32xf32>
    %106 = arith.addf %104, %105 : vector<2x32xf32>
    %107 = math.tanh %106 : vector<2x32xf32>
    %108 = arith.mulf %103, %107 : vector<2x32xf32>
    %109 = vector.extract_strided_slice %6 {offsets = [8, 0], sizes = [2, 128], strides = [1, 1]} : vector<16x128xf32> to vector<2x128xf32>
    %cst_21 = arith.constant dense<0.000000e+00> : vector<2x128xf32>
    %110 = tpu.matmul %108, %1, %cst_21 {dimension_numbers = #tpu.dot_dimension_numbers<[1], [0], [0], [1], [0, 0, 1, 1], [], []>} : vector<2x32xf32>, vector<32x128xf32>, vector<2x128xf32> -> vector<2x128xf32>
    %111 = arith.addf %109, %110 : vector<2x128xf32>
    %112 = vector.extract_strided_slice %111 {offsets = [0, 0], sizes = [2, 32], strides = [1, 1]} : vector<2x128xf32> to vector<2x32xf32>
    %113 = arith.negf %112 : vector<2x32xf32>
    %114 = math.exp %113 : vector<2x32xf32>
    %cst_22 = arith.constant 1.000000e+00 : f32
    %115 = vector.broadcast %cst_22 : f32 to vector<2x32xf32>
    %116 = arith.addf %115, %114 : vector<2x32xf32>
    %117 = arith.divf %115, %116 : vector<2x32xf32>
    %118 = vector.extract_strided_slice %111 {offsets = [0, 32], sizes = [2, 32], strides = [1, 1]} : vector<2x128xf32> to vector<2x32xf32>
    %119 = arith.negf %118 : vector<2x32xf32>
    %120 = math.exp %119 : vector<2x32xf32>
    %cst_23 = arith.constant 1.000000e+00 : f32
    %121 = vector.broadcast %cst_23 : f32 to vector<2x32xf32>
    %122 = arith.addf %121, %120 : vector<2x32xf32>
    %123 = arith.divf %121, %122 : vector<2x32xf32>
    %124 = vector.extract_strided_slice %111 {offsets = [0, 64], sizes = [2, 32], strides = [1, 1]} : vector<2x128xf32> to vector<2x32xf32>
    %125 = math.tanh %124 : vector<2x32xf32>
    %126 = vector.extract_strided_slice %111 {offsets = [0, 96], sizes = [2, 32], strides = [1, 1]} : vector<2x128xf32> to vector<2x32xf32>
    %127 = arith.negf %126 : vector<2x32xf32>
    %128 = math.exp %127 : vector<2x32xf32>
    %cst_24 = arith.constant 1.000000e+00 : f32
    %129 = vector.broadcast %cst_24 : f32 to vector<2x32xf32>
    %130 = arith.addf %129, %128 : vector<2x32xf32>
    %131 = arith.divf %129, %130 : vector<2x32xf32>
    %132 = arith.mulf %123, %106 : vector<2x32xf32>
    %133 = arith.mulf %117, %125 : vector<2x32xf32>
    %134 = arith.addf %132, %133 : vector<2x32xf32>
    %135 = math.tanh %134 : vector<2x32xf32>
    %136 = arith.mulf %131, %135 : vector<2x32xf32>
    %137 = vector.extract_strided_slice %6 {offsets = [10, 0], sizes = [2, 128], strides = [1, 1]} : vector<16x128xf32> to vector<2x128xf32>
    %cst_25 = arith.constant dense<0.000000e+00> : vector<2x128xf32>
    %138 = tpu.matmul %136, %1, %cst_25 {dimension_numbers = #tpu.dot_dimension_numbers<[1], [0], [0], [1], [0, 0, 1, 1], [], []>} : vector<2x32xf32>, vector<32x128xf32>, vector<2x128xf32> -> vector<2x128xf32>
    %139 = arith.addf %137, %138 : vector<2x128xf32>
    %140 = vector.extract_strided_slice %139 {offsets = [0, 0], sizes = [2, 32], strides = [1, 1]} : vector<2x128xf32> to vector<2x32xf32>
    %141 = arith.negf %140 : vector<2x32xf32>
    %142 = math.exp %141 : vector<2x32xf32>
    %cst_26 = arith.constant 1.000000e+00 : f32
    %143 = vector.broadcast %cst_26 : f32 to vector<2x32xf32>
    %144 = arith.addf %143, %142 : vector<2x32xf32>
    %145 = arith.divf %143, %144 : vector<2x32xf32>
    %146 = vector.extract_strided_slice %139 {offsets = [0, 32], sizes = [2, 32], strides = [1, 1]} : vector<2x128xf32> to vector<2x32xf32>
    %147 = arith.negf %146 : vector<2x32xf32>
    %148 = math.exp %147 : vector<2x32xf32>
    %cst_27 = arith.constant 1.000000e+00 : f32
    %149 = vector.broadcast %cst_27 : f32 to vector<2x32xf32>
    %150 = arith.addf %149, %148 : vector<2x32xf32>
    %151 = arith.divf %149, %150 : vector<2x32xf32>
    %152 = vector.extract_strided_slice %139 {offsets = [0, 64], sizes = [2, 32], strides = [1, 1]} : vector<2x128xf32> to vector<2x32xf32>
    %153 = math.tanh %152 : vector<2x32xf32>
    %154 = vector.extract_strided_slice %139 {offsets = [0, 96], sizes = [2, 32], strides = [1, 1]} : vector<2x128xf32> to vector<2x32xf32>
    %155 = arith.negf %154 : vector<2x32xf32>
    %156 = math.exp %155 : vector<2x32xf32>
    %cst_28 = arith.constant 1.000000e+00 : f32
    %157 = vector.broadcast %cst_28 : f32 to vector<2x32xf32>
    %158 = arith.addf %157, %156 : vector<2x32xf32>
    %159 = arith.divf %157, %158 : vector<2x32xf32>
    %160 = arith.mulf %151, %134 : vector<2x32xf32>
    %161 = arith.mulf %145, %153 : vector<2x32xf32>
    %162 = arith.addf %160, %161 : vector<2x32xf32>
    %163 = math.tanh %162 : vector<2x32xf32>
    %164 = arith.mulf %159, %163 : vector<2x32xf32>
    %165 = vector.extract_strided_slice %6 {offsets = [12, 0], sizes = [2, 128], strides = [1, 1]} : vector<16x128xf32> to vector<2x128xf32>
    %cst_29 = arith.constant dense<0.000000e+00> : vector<2x128xf32>
    %166 = tpu.matmul %164, %1, %cst_29 {dimension_numbers = #tpu.dot_dimension_numbers<[1], [0], [0], [1], [0, 0, 1, 1], [], []>} : vector<2x32xf32>, vector<32x128xf32>, vector<2x128xf32> -> vector<2x128xf32>
    %167 = arith.addf %165, %166 : vector<2x128xf32>
    %168 = vector.extract_strided_slice %167 {offsets = [0, 0], sizes = [2, 32], strides = [1, 1]} : vector<2x128xf32> to vector<2x32xf32>
    %169 = arith.negf %168 : vector<2x32xf32>
    %170 = math.exp %169 : vector<2x32xf32>
    %cst_30 = arith.constant 1.000000e+00 : f32
    %171 = vector.broadcast %cst_30 : f32 to vector<2x32xf32>
    %172 = arith.addf %171, %170 : vector<2x32xf32>
    %173 = arith.divf %171, %172 : vector<2x32xf32>
    %174 = vector.extract_strided_slice %167 {offsets = [0, 32], sizes = [2, 32], strides = [1, 1]} : vector<2x128xf32> to vector<2x32xf32>
    %175 = arith.negf %174 : vector<2x32xf32>
    %176 = math.exp %175 : vector<2x32xf32>
    %cst_31 = arith.constant 1.000000e+00 : f32
    %177 = vector.broadcast %cst_31 : f32 to vector<2x32xf32>
    %178 = arith.addf %177, %176 : vector<2x32xf32>
    %179 = arith.divf %177, %178 : vector<2x32xf32>
    %180 = vector.extract_strided_slice %167 {offsets = [0, 64], sizes = [2, 32], strides = [1, 1]} : vector<2x128xf32> to vector<2x32xf32>
    %181 = math.tanh %180 : vector<2x32xf32>
    %182 = vector.extract_strided_slice %167 {offsets = [0, 96], sizes = [2, 32], strides = [1, 1]} : vector<2x128xf32> to vector<2x32xf32>
    %183 = arith.negf %182 : vector<2x32xf32>
    %184 = math.exp %183 : vector<2x32xf32>
    %cst_32 = arith.constant 1.000000e+00 : f32
    %185 = vector.broadcast %cst_32 : f32 to vector<2x32xf32>
    %186 = arith.addf %185, %184 : vector<2x32xf32>
    %187 = arith.divf %185, %186 : vector<2x32xf32>
    %188 = arith.mulf %179, %162 : vector<2x32xf32>
    %189 = arith.mulf %173, %181 : vector<2x32xf32>
    %190 = arith.addf %188, %189 : vector<2x32xf32>
    %191 = math.tanh %190 : vector<2x32xf32>
    %192 = arith.mulf %187, %191 : vector<2x32xf32>
    %193 = vector.extract_strided_slice %6 {offsets = [14, 0], sizes = [2, 128], strides = [1, 1]} : vector<16x128xf32> to vector<2x128xf32>
    %cst_33 = arith.constant dense<0.000000e+00> : vector<2x128xf32>
    %194 = tpu.matmul %192, %1, %cst_33 {dimension_numbers = #tpu.dot_dimension_numbers<[1], [0], [0], [1], [0, 0, 1, 1], [], []>} : vector<2x32xf32>, vector<32x128xf32>, vector<2x128xf32> -> vector<2x128xf32>
    %195 = arith.addf %193, %194 : vector<2x128xf32>
    %196 = vector.extract_strided_slice %195 {offsets = [0, 0], sizes = [2, 32], strides = [1, 1]} : vector<2x128xf32> to vector<2x32xf32>
    %197 = arith.negf %196 : vector<2x32xf32>
    %198 = math.exp %197 : vector<2x32xf32>
    %cst_34 = arith.constant 1.000000e+00 : f32
    %199 = vector.broadcast %cst_34 : f32 to vector<2x32xf32>
    %200 = arith.addf %199, %198 : vector<2x32xf32>
    %201 = arith.divf %199, %200 : vector<2x32xf32>
    %202 = vector.extract_strided_slice %195 {offsets = [0, 32], sizes = [2, 32], strides = [1, 1]} : vector<2x128xf32> to vector<2x32xf32>
    %203 = arith.negf %202 : vector<2x32xf32>
    %204 = math.exp %203 : vector<2x32xf32>
    %cst_35 = arith.constant 1.000000e+00 : f32
    %205 = vector.broadcast %cst_35 : f32 to vector<2x32xf32>
    %206 = arith.addf %205, %204 : vector<2x32xf32>
    %207 = arith.divf %205, %206 : vector<2x32xf32>
    %208 = vector.extract_strided_slice %195 {offsets = [0, 64], sizes = [2, 32], strides = [1, 1]} : vector<2x128xf32> to vector<2x32xf32>
    %209 = math.tanh %208 : vector<2x32xf32>
    %210 = vector.extract_strided_slice %195 {offsets = [0, 96], sizes = [2, 32], strides = [1, 1]} : vector<2x128xf32> to vector<2x32xf32>
    %211 = arith.negf %210 : vector<2x32xf32>
    %212 = math.exp %211 : vector<2x32xf32>
    %cst_36 = arith.constant 1.000000e+00 : f32
    %213 = vector.broadcast %cst_36 : f32 to vector<2x32xf32>
    %214 = arith.addf %213, %212 : vector<2x32xf32>
    %215 = arith.divf %213, %214 : vector<2x32xf32>
    %216 = arith.mulf %207, %190 : vector<2x32xf32>
    %217 = arith.mulf %201, %209 : vector<2x32xf32>
    %218 = arith.addf %216, %217 : vector<2x32xf32>
    %219 = math.tanh %218 : vector<2x32xf32>
    %220 = arith.mulf %215, %219 : vector<2x32xf32>
    %221 = vector.extract_strided_slice %0 {offsets = [14, 0], sizes = [2, 16], strides = [1, 1]} : vector<16x16xf32> to vector<2x16xf32>
    %c0_37 = arith.constant 0 : index
    %c0_38 = arith.constant 0 : index
    %222 = vector.load %arg4[%c0_37, %c0_38] : memref<16x128xf32, #tpu.memory_space<vmem>>, vector<16x128xf32>
    %cst_39 = arith.constant dense<0.000000e+00> : vector<2x128xf32>
    %223 = tpu.matmul %221, %222, %cst_39 {dimension_numbers = #tpu.dot_dimension_numbers<[1], [0], [0], [1], [0, 0, 1, 1], [], []>} : vector<2x16xf32>, vector<16x128xf32>, vector<2x128xf32> -> vector<2x128xf32>
    %c0_40 = arith.constant 0 : index
    %c0_41 = arith.constant 0 : index
    %224 = vector.load %arg5[%c0_40, %c0_41] : memref<1x128xf32, #tpu.memory_space<vmem>>, vector<1x128xf32>
    %225 = vector.broadcast %224 : vector<1x128xf32> to vector<2x128xf32>
    %226 = arith.addf %223, %225 : vector<2x128xf32>
    %227 = vector.extract_strided_slice %226 {offsets = [0, 0], sizes = [2, 32], strides = [1, 1]} : vector<2x128xf32> to vector<2x32xf32>
    %228 = arith.negf %227 : vector<2x32xf32>
    %229 = math.exp %228 : vector<2x32xf32>
    %cst_42 = arith.constant 1.000000e+00 : f32
    %230 = vector.broadcast %cst_42 : f32 to vector<2x32xf32>
    %231 = arith.addf %230, %229 : vector<2x32xf32>
    %232 = arith.divf %230, %231 : vector<2x32xf32>
    %233 = vector.extract_strided_slice %226 {offsets = [0, 64], sizes = [2, 32], strides = [1, 1]} : vector<2x128xf32> to vector<2x32xf32>
    %234 = math.tanh %233 : vector<2x32xf32>
    %235 = vector.extract_strided_slice %226 {offsets = [0, 96], sizes = [2, 32], strides = [1, 1]} : vector<2x128xf32> to vector<2x32xf32>
    %236 = arith.negf %235 : vector<2x32xf32>
    %237 = math.exp %236 : vector<2x32xf32>
    %cst_43 = arith.constant 1.000000e+00 : f32
    %238 = vector.broadcast %cst_43 : f32 to vector<2x32xf32>
    %239 = arith.addf %238, %237 : vector<2x32xf32>
    %240 = arith.divf %238, %239 : vector<2x32xf32>
    %241 = arith.mulf %232, %234 : vector<2x32xf32>
    %242 = math.tanh %241 : vector<2x32xf32>
    %243 = arith.mulf %240, %242 : vector<2x32xf32>
    %c0_44 = arith.constant 0 : index
    %c0_45 = arith.constant 0 : index
    %244 = vector.load %arg6[%c0_44, %c0_45] : memref<1x64xf32, #tpu.memory_space<vmem>>, vector<1x64xf32>
    %245 = vector.extract_strided_slice %244 {offsets = [0, 0], sizes = [1, 32], strides = [1, 1]} : vector<1x64xf32> to vector<1x32xf32>
    %246 = vector.broadcast %245 : vector<1x32xf32> to vector<2x32xf32>
    %247 = arith.mulf %220, %246 : vector<2x32xf32>
    %cst_46 = arith.constant dense<0.000000e+00> : vector<2xf32>
    %248 = vector.multi_reduction <add>, %247, %cst_46 [1] : vector<2x32xf32> to vector<2xf32>
    %249 = vector.shape_cast %248 : vector<2xf32> to vector<2x1xf32>
    %250 = vector.extract_strided_slice %244 {offsets = [0, 32], sizes = [1, 32], strides = [1, 1]} : vector<1x64xf32> to vector<1x32xf32>
    %251 = vector.broadcast %250 : vector<1x32xf32> to vector<2x32xf32>
    %252 = arith.mulf %243, %251 : vector<2x32xf32>
    %cst_47 = arith.constant dense<0.000000e+00> : vector<2xf32>
    %253 = vector.multi_reduction <add>, %252, %cst_47 [1] : vector<2x32xf32> to vector<2xf32>
    %254 = vector.shape_cast %253 : vector<2xf32> to vector<2x1xf32>
    %255 = arith.addf %249, %254 : vector<2x1xf32>
    %c0_48 = arith.constant 0 : index
    %c0_49 = arith.constant 0 : index
    %256 = vector.load %arg7[%c0_48, %c0_49] : memref<1x1xf32, #tpu.memory_space<vmem>>, vector<1x1xf32>
    %257 = vector.broadcast %256 : vector<1x1xf32> to vector<2x1xf32>
    %258 = arith.addf %255, %257 : vector<2x1xf32>
    %c0_50 = arith.constant 0 : index
    %c0_51 = arith.constant 0 : index
    %259 = vector.load %arg8[%c0_50, %c0_51] : memref<2x1xf32, #tpu.memory_space<vmem>>, vector<2x1xf32>
    tpu.vector_store %arg8[%c0_50, %c0_51], %258 {strides = array<i32>} : memref<2x1xf32, #tpu.memory_space<vmem>>, vector<2x1xf32>,
    return
  }
}

</mosaic_0001>

<llo_original>
// kernel: tpu_custom_call.1
$region0: #{tpu_custom_call.1}
  #allocation0 [shape = 'u32[]', space=smem, size = 0x4, offset = 0x4, fixed_abs, tag = 'smem constant byte address 0x4 - core index']
  #allocation1 [shape = 'u32[72,128]{1,0:T(1,128)}', space=vmem, size = 0x9000, scoped, tag = 'internal scratch']
  #allocation2 [shape = 'f32[1,1]{1,0:T(1,128)S(1)}', space=vmem, size = 0x200, scoped, tag = 'scoped memory for tpu_custom_call.1']
  %s0 = inlined_call_operand.hbm [shape: f32[16,16], index: 0, kind: input, shape index: {}]
  %s1 = inlined_call_operand.hbm [shape: f32[16,128], index: 1, kind: input, shape index: {}]
  %s2 = inlined_call_operand.hbm [shape: f32[32,128], index: 2, kind: input, shape index: {}]
  %s3 = inlined_call_operand.vmem [shape: f32[1,128], index: 3, kind: input, shape index: {}]
  %s4 = inlined_call_operand.hbm [shape: f32[16,128], index: 4, kind: input, shape index: {}]
  %s5 = inlined_call_operand.vmem [shape: f32[1,128], index: 5, kind: input, shape index: {}]
  %s6 = inlined_call_operand.vmem [shape: f32[1,64], index: 6, kind: input, shape index: {}]
  %s7 = inlined_call_operand.<no memory space> [shape: f32[1,1], index: 7, kind: input, shape index: {}]
  %s8 = inlined_call_operand.vmem [shape: f32[2,1], index: 8, kind: output, shape index: {}]
  %s9 = sld [smem:[#allocation0]]
  $region58: #{tpu_custom_call.1} parent=0
    _
  %s11 = ssub.s32 1, %s9
  %s12 = scalar_select 0, %s11, %s9
  %v13 = vstv %s7
  %14 = vst [vmem:[#allocation2] sm:$0x1] %v13
  $region1: #{tpu_custom_call.1} parent=0
    #allocation3 [shape = 'u8[8192]{0}', space=vmem, size = 0x2000, scoped, tag = 'input window, operand 0, single buffered']
    #allocation4 [shape = 's32[1]{0}', space=sflag, size = 0x4, scoped, tag = 'scoped memory for tpu_custom_call.1']
    #allocation5 [shape = 'u8[8192]{0}', space=vmem, size = 0x2000, scoped, tag = 'input window, operand 1, single buffered']
    #allocation6 [shape = 's32[1]{0}', space=sflag, size = 0x4, scoped, tag = 'scoped memory for tpu_custom_call.1']
    #allocation7 [shape = 'u8[16384]{0}', space=vmem, size = 0x4000, scoped, tag = 'input window, operand 2, single buffered']
    #allocation8 [shape = 'u8[8192]{0}', space=vmem, size = 0x2000, scoped, tag = 'input window, operand 4, single buffered']
    #allocation9 [shape = 's32[1]{0}', space=sflag, size = 0x4, scoped, tag = 'scoped memory for tpu_custom_call.1']
    %15 = vsyncpa [#allocation4], 0
    %16 = vsyncpa [#allocation6], 0
    %17 = vsyncpa [#allocation9], 0
    // Predicated region
    $region2: #{tpu_custom_call.1} parent=1 // pred_check
      _
    $region3: #{tpu_custom_call.1} parent=1 // pred_check_branch
      %19 = sbr.rel (0) target = $region5
    $region4: #{tpu_custom_call.1} parent=1 // pred_region
      %21 = vsyncadd [#allocation4], 0
      %s22 = sshll.u32 %s0, 4
      %s23 = int_to_ptr.hbm [resolvable:$true] %s22
      %s24 = sshll.u32 [#allocation3], 4
      %s25 = int_to_ptr.vmem [resolvable:$true] %s24
      %30 = dma.hbm_to_vmem [thread:$0]  %s23, 256, %s25, [#allocation4], 128, 128, 8
    $region5: #{tpu_custom_call.1} parent=1 // pred_fallthru
      _
    // Predicated region
    $region6: #{tpu_custom_call.1} parent=1 // pred_check
      _
    $region7: #{tpu_custom_call.1} parent=1 // pred_check_branch
      %32 = sbr.rel (0) target = $region9
    $region8: #{tpu_custom_call.1} parent=1 // pred_region
      %34 = vsyncadd [#allocation6], 0
      %s35 = sshll.u32 %s1, 4
      %s36 = int_to_ptr.hbm [resolvable:$true] %s35
      %s37 = sshll.u32 [#allocation5], 4
      %s38 = int_to_ptr.vmem [resolvable:$true] %s37
      %43 = dma.hbm_to_vmem [thread:$0]  %s36, 256, %s38, [#allocation6], 128, 128, 8
    $region9: #{tpu_custom_call.1} parent=1 // pred_fallthru
      _
    // Predicated region
    $region10: #{tpu_custom_call.1} parent=1 // pred_check
      _
    $region11: #{tpu_custom_call.1} parent=1 // pred_check_branch
      %45 = sbr.rel (0) target = $region13
    $region12: #{tpu_custom_call.1} parent=1 // pred_region
      %47 = vsyncadd [#allocation6], 0
      %s48 = sshll.u32 %s2, 4
      %s49 = int_to_ptr.hbm [resolvable:$true] %s48
      %s50 = sshll.u32 [#allocation7], 4
      %s51 = int_to_ptr.vmem [resolvable:$true] %s50
      %56 = dma.hbm_to_vmem [thread:$0]  %s49, 512, %s51, [#allocation6], 128, 128, 8
    $region13: #{tpu_custom_call.1} parent=1 // pred_fallthru
      _
    // Predicated region
    $region14: #{tpu_custom_call.1} parent=1 // pred_check
      _
    $region15: #{tpu_custom_call.1} parent=1 // pred_check_branch
      %58 = sbr.rel (0) target = $region17
    $region16: #{tpu_custom_call.1} parent=1 // pred_region
      _
    $region17: #{tpu_custom_call.1} parent=1 // pred_fallthru
      _
    // Predicated region
    $region18: #{tpu_custom_call.1} parent=1 // pred_check
      _
    $region19: #{tpu_custom_call.1} parent=1 // pred_check_branch
      %60 = sbr.rel (0) target = $region21
    $region20: #{tpu_custom_call.1} parent=1 // pred_region
      %62 = vsyncadd [#allocation9], 0
      %s63 = sshll.u32 %s4, 4
      %s64 = int_to_ptr.hbm [resolvable:$true] %s63
      %s65 = sshll.u32 [#allocation8], 4
      %s66 = int_to_ptr.vmem [resolvable:$true] %s65
      %71 = dma.hbm_to_vmem [thread:$0]  %s64, 256, %s66, [#allocation9], 128, 128, 8
    $region21: #{tpu_custom_call.1} parent=1 // pred_fallthru
      _
    // Predicated region
    $region22: #{tpu_custom_call.1} parent=1 // pred_check
      _
    $region23: #{tpu_custom_call.1} parent=1 // pred_check_branch
      %73 = sbr.rel (0) target = $region25
    $region24: #{tpu_custom_call.1} parent=1 // pred_region
      _
    $region25: #{tpu_custom_call.1} parent=1 // pred_fallthru
      _
    // Predicated region
    $region26: #{tpu_custom_call.1} parent=1 // pred_check
      _
    $region27: #{tpu_custom_call.1} parent=1 // pred_check_branch
      %75 = sbr.rel (0) target = $region29
    $region28: #{tpu_custom_call.1} parent=1 // pred_region
      _
    $region29: #{tpu_custom_call.1} parent=1 // pred_fallthru
      _
    // Predicated region
    $region30: #{tpu_custom_call.1} parent=1 // pred_check
      _
    $region31: #{tpu_custom_call.1} parent=1 // pred_check_branch
      %77 = sbr.rel (0) target = $region33
    $region32: #{tpu_custom_call.1} parent=1 // pred_region
      _
    $region33: #{tpu_custom_call.1} parent=1 // pred_fallthru
      _
    // Predicated region
    $region34: #{tpu_custom_call.1} parent=1 // pred_check
      _
    $region35: #{tpu_custom_call.1} parent=1 // pred_check_branch
      %79 = sbr.rel (0) target = $region37
    $region36: #{tpu_custom_call.1} parent=1 // pred_region
      %81 = dma.done [#allocation4], 256
    $region37: #{tpu_custom_call.1} parent=1 // pred_fallthru
      _
    // Predicated region
    $region38: #{tpu_custom_call.1} parent=1 // pred_check
      _
    $region39: #{tpu_custom_call.1} parent=1 // pred_check_branch
      %83 = sbr.rel (0) target = $region41
    $region40: #{tpu_custom_call.1} parent=1 // pred_region
      %85 = dma.done [#allocation6], 256
    $region41: #{tpu_custom_call.1} parent=1 // pred_fallthru
      _
    // Predicated region
    $region42: #{tpu_custom_call.1} parent=1 // pred_check
      _
    $region43: #{tpu_custom_call.1} parent=1 // pred_check_branch
      %87 = sbr.rel (0) target = $region45
    $region44: #{tpu_custom_call.1} parent=1 // pred_region
      %89 = dma.done [#allocation6], 512
    $region45: #{tpu_custom_call.1} parent=1 // pred_fallthru
      _
    // Predicated region
    $region46: #{tpu_custom_call.1} parent=1 // pred_check
      _
    $region47: #{tpu_custom_call.1} parent=1 // pred_check_branch
      %91 = sbr.rel (0) target = $region49
    $region48: #{tpu_custom_call.1} parent=1 // pred_region
      %93 = dma.done [#allocation9], 256
    $region49: #{tpu_custom_call.1} parent=1 // pred_fallthru
      _
    %v94 = vld [vmem:[#allocation3] sm:$0xff]
    %v95 = vld [vmem:[#allocation3 + $0x8] sm:$0xff]
    %v96 = vld [vmem:[#allocation7] sm:$0xff]
    %v97 = vld [vmem:[#allocation7 + $0x8] sm:$0xff]
    %v98 = vld [vmem:[#allocation7 + $0x10] sm:$0xff]
    %v99 = vld [vmem:[#allocation7 + $0x18] sm:$0xff]
    %v100 = vld [vmem:[#allocation5] sm:$0xff]
    %v101 = vld [vmem:[#allocation5 + $0x8] sm:$0xff]
    %v102 = vld [vmem:[%s3] sm:$0x1]
    %v104 = vperm.slane %v102, 0
    %vm106 = vcmask 130048
    %v108 = vsel %vm106, %v94, 0
    %v111 = vsel %vm106, %v95, 0
    %113 = vmatpush.msra.mxu0 0.0
    %114 = vmatpush.msra.mxu0 0.0
    %115 = vmatpush.msra.mxu0 0.0
    %116 = vmatpush.msra.mxu0 0.0
    %117 = vmatpush.msra.mxu0 0.0
    %118 = vmatpush.msra.mxu0 0.0
    %119 = vmatpush.msra.mxu0 0.0
    %120 = vmatpush.msra.mxu0 0.0
    %121 = vmatpush.msra.mxu0 0.0
    %122 = vmatpush.msra.mxu0 0.0
    %123 = vmatpush.msra.mxu0 0.0
    %124 = vmatpush.msra.mxu0 0.0
    %125 = vmatpush.msra.mxu0 0.0
    %126 = vmatpush.msra.mxu0 0.0
    %127 = vmatpush.msra.mxu0 %v101
    %128 = vmatpush.msra.mxu0 %v100
    %129 = vmatmul.f32.gmra.mxu0 %v108
    %v130 = vpop.f32.mrf.mxu0
    %v131 = vadd.f32 %v104, %v130
    %132 = vmatmul.f32.gmra.mxu0 %v111
    %v133 = vpop.f32.mrf.mxu0
    %v134 = vadd.f32 %v104, %v133
    %135 = vdwg.mxu0
    %v136 = vxor.u32 %v131, 2147483648
    %v137 = vmul.f32 %v136, 1.442695
    %v138 = vpow.pop %v137
    %v139 = vadd.f32 %v138, 1.0
    %v140 = vrcp.pop %v139
    %v141 = vmul.f32 %v139, %v140
    %v142 = vsub.f32 1.0, %v141
    %v143 = vmul.f32 %v140, %v142
    %v144 = vadd.f32 %v140, %v143
    %vm145 = vweird.f32 %v139
    %vm146 = vweird.f32 %v140
    %vm147 = vmor %vm145, %vm146
    %v148 = vsel %vm147, %v140, %v144
    %v149 = vand.u32 2147483647, %v139
    %vm150 = vcmp.eq.f32.partialorder %v149, 8.507059e+37
    %v151 = vand.u32 %v139, 2147483648
    %v152 = vor.u32 1.1754944e-38, %v151
    %v153 = vsel %vm150, %v152, %v148
    %v154 = vmul.f32 1.0, %v153
    %v155 = vtanh.pop %v131
    %157 = vrot.lane.b32.xlu0 %v155, 64
    %v158 = vpop.permute.xlu0 %157
    %v160 = vmul.f32 %v154, %v158
    %v161 = vtanh.pop %v160
    %163 = vrot.lane.b32.xlu0 %v161, 96
    %v164 = vpop.permute.xlu0 %163
    %v166 = vmul.f32 %v154, %v164
    %168 = vrot.lane.b32.xlu0 %v166, 32
    %v169 = vpop.permute.xlu0 %168
    %vm170 = vcmask 261120
    %v171 = vsel %vm170, %v169, 0
    %173 = vmatpush.msra.mxu0 0.0
    %174 = vmatpush.msra.mxu0 0.0
    %175 = vmatpush.msra.mxu0 0.0
    %176 = vmatpush.msra.mxu0 0.0
    %177 = vmatpush.msra.mxu0 0.0
    %178 = vmatpush.msra.mxu0 0.0
    %179 = vmatpush.msra.mxu0 0.0
    %180 = vmatpush.msra.mxu0 0.0
    %181 = vmatpush.msra.mxu0 0.0
    %182 = vmatpush.msra.mxu0 0.0
    %183 = vmatpush.msra.mxu0 0.0
    %184 = vmatpush.msra.mxu0 0.0
    %185 = vmatpush.msra.mxu0 %v99
    %186 = vmatpush.msra.mxu0 %v98
    %187 = vmatpush.msra.mxu0 %v97
    %188 = vmatpush.msra.mxu0 %v96
    %189 = vmatmul.f32.gmra.mxu0 %v171
    %v190 = vpop.f32.mrf.mxu0
    %v191 = vadd.f32 0.0, %v190
    %192 = vdwg.mxu0
    %v194 = vrot.slane %v191, 6
    %v196 = vadd.f32 %v131, %v194
    %v197 = vxor.u32 %v196, 2147483648
    %v198 = vmul.f32 %v197, 1.442695
    %v199 = vpow.pop %v198
    %v200 = vadd.f32 %v199, 1.0
    %v201 = vrcp.pop %v200
    %v202 = vmul.f32 %v200, %v201
    %v203 = vsub.f32 1.0, %v202
    %v204 = vmul.f32 %v201, %v203
    %v205 = vadd.f32 %v201, %v204
    %vm206 = vweird.f32 %v200
    %vm207 = vweird.f32 %v201
    %vm208 = vmor %vm206, %vm207
    %v209 = vsel %vm208, %v201, %v205
    %v210 = vand.u32 2147483647, %v200
    %vm211 = vcmp.eq.f32.partialorder %v210, 8.507059e+37
    %v212 = vand.u32 %v200, 2147483648
    %v213 = vor.u32 1.1754944e-38, %v212
    %v214 = vsel %vm211, %v213, %v209
    %v215 = vmul.f32 1.0, %v214
    %v216 = vtanh.pop %v196
    %v218 = vrot.slane %v160, 6
    %219 = vrot.lane.b32.xlu0 %v218, 32
    %v220 = vpop.permute.xlu0 %219
    %v222 = vmul.f32 %v215, %v220
    %224 = vrot.lane.b32.xlu0 %v216, 64
    %v225 = vpop.permute.xlu0 %224
    %v227 = vmul.f32 %v215, %v225
    %229 = vrot.lane.b32.xlu0 %v227, 32
    %v230 = vpop.permute.xlu0 %229
    %v232 = vadd.f32 %v222, %v230
    %v233 = vtanh.pop %v232
    %235 = vrot.lane.b32.xlu0 %v233, 64
    %v236 = vpop.permute.xlu0 %235
    %v238 = vmul.f32 %v215, %v236
    %v240 = vrot.slane %v238, 2
    %241 = vrot.lane.b32.xlu0 %v240, 32
    %v242 = vpop.permute.xlu0 %241
    %v243 = vsel %vm170, %v242, 0
    %245 = vmatpush.msra.mxu0 0.0
    %246 = vmatpush.msra.mxu0 0.0
    %247 = vmatpush.msra.mxu0 0.0
    %248 = vmatpush.msra.mxu0 0.0
    %249 = vmatpush.msra.mxu0 0.0
    %250 = vmatpush.msra.mxu0 0.0
    %251 = vmatpush.msra.mxu0 0.0
    %252 = vmatpush.msra.mxu0 0.0
    %253 = vmatpush.msra.mxu0 0.0
    %254 = vmatpush.msra.mxu0 0.0
    %255 = vmatpush.msra.mxu0 0.0
    %256 = vmatpush.msra.mxu0 0.0
    %257 = vmatpush.msra.mxu0 %v99
    %258 = vmatpush.msra.mxu0 %v98
    %259 = vmatpush.msra.mxu0 %v97
    %260 = vmatpush.msra.mxu0 %v96
    %261 = vmatmul.f32.gmra.mxu0 %v243
    %v262 = vpop.f32.mrf.mxu0
    %v263 = vadd.f32 0.0, %v262
    %264 = vdwg.mxu0
    %v266 = vrot.slane %v263, 4
    %v268 = vadd.f32 %v131, %v266
    %v269 = vxor.u32 %v268, 2147483648
    %v270 = vmul.f32 %v269, 1.442695
    %v271 = vpow.pop %v270
    %v272 = vadd.f32 %v271, 1.0
    %v273 = vrcp.pop %v272
    %v274 = vmul.f32 %v272, %v273
    %v275 = vsub.f32 1.0, %v274
    %v276 = vmul.f32 %v273, %v275
    %v277 = vadd.f32 %v273, %v276
    %vm278 = vweird.f32 %v272
    %vm279 = vweird.f32 %v273
    %vm280 = vmor %vm278, %vm279
    %v281 = vsel %vm280, %v273, %v277
    %v282 = vand.u32 2147483647, %v272
    %vm283 = vcmp.eq.f32.partialorder %v282, 8.507059e+37
    %v284 = vand.u32 %v272, 2147483648
    %v285 = vor.u32 1.1754944e-38, %v284
    %v286 = vsel %vm283, %v285, %v281
    %v287 = vmul.f32 1.0, %v286
    %v288 = vtanh.pop %v268
    %v290 = vrot.slane %v232, 6
    %v292 = vmul.f32 %v287, %v290
    %294 = vrot.lane.b32.xlu0 %v288, 64
    %v295 = vpop.permute.xlu0 %294
    %v297 = vmul.f32 %v287, %v295
    %299 = vrot.lane.b32.xlu0 %v297, 32
    %v300 = vpop.permute.xlu0 %299
    %v302 = vadd.f32 %v292, %v300
    %v303 = vtanh.pop %v302
    %305 = vrot.lane.b32.xlu0 %v303, 64
    %v306 = vpop.permute.xlu0 %305
    %v308 = vmul.f32 %v287, %v306
    %v310 = vrot.slane %v308, 4
    %311 = vrot.lane.b32.xlu0 %v310, 32
    %v312 = vpop.permute.xlu0 %311
    %v313 = vsel %vm170, %v312, 0
    %315 = vmatpush.msra.mxu0 0.0
    %316 = vmatpush.msra.mxu0 0.0
    %317 = vmatpush.msra.mxu0 0.0
    %318 = vmatpush.msra.mxu0 0.0
    %319 = vmatpush.msra.mxu0 0.0
    %320 = vmatpush.msra.mxu0 0.0
    %321 = vmatpush.msra.mxu0 0.0
    %322 = vmatpush.msra.mxu0 0.0
    %323 = vmatpush.msra.mxu0 0.0
    %324 = vmatpush.msra.mxu0 0.0
    %325 = vmatpush.msra.mxu0 0.0
    %326 = vmatpush.msra.mxu0 0.0
    %327 = vmatpush.msra.mxu0 %v99
    %328 = vmatpush.msra.mxu0 %v98
    %329 = vmatpush.msra.mxu0 %v97
    %330 = vmatpush.msra.mxu0 %v96
    %331 = vmatmul.f32.gmra.mxu0 %v313
    %v332 = vpop.f32.mrf.mxu0
    %v333 = vadd.f32 0.0, %v332
    %334 = vdwg.mxu0
    %v336 = vrot.slane %v333, 2
    %v338 = vadd.f32 %v131, %v336
    %v339 = vxor.u32 %v338, 2147483648
    %v340 = vmul.f32 %v339, 1.442695
    %v341 = vpow.pop %v340
    %v342 = vadd.f32 %v341, 1.0
    %v343 = vrcp.pop %v342
    %v344 = vmul.f32 %v342, %v343
    %v345 = vsub.f32 1.0, %v344
    %v346 = vmul.f32 %v343, %v345
    %v347 = vadd.f32 %v343, %v346
    %vm348 = vweird.f32 %v342
    %vm349 = vweird.f32 %v343
    %vm350 = vmor %vm348, %vm349
    %v351 = vsel %vm350, %v343, %v347
    %v352 = vand.u32 2147483647, %v342
    %vm353 = vcmp.eq.f32.partialorder %v352, 8.507059e+37
    %v354 = vand.u32 %v342, 2147483648
    %v355 = vor.u32 1.1754944e-38, %v354
    %v356 = vsel %vm353, %v355, %v351
    %v357 = vmul.f32 1.0, %v356
    %v358 = vtanh.pop %v338
    %v360 = vrot.slane %v302, 6
    %v362 = vmul.f32 %v357, %v360
    %364 = vrot.lane.b32.xlu0 %v358, 64
    %v365 = vpop.permute.xlu0 %364
    %v367 = vmul.f32 %v357, %v365
    %369 = vrot.lane.b32.xlu0 %v367, 32
    %v370 = vpop.permute.xlu0 %369
    %v372 = vadd.f32 %v362, %v370
    %v373 = vtanh.pop %v372
    %375 = vrot.lane.b32.xlu0 %v373, 64
    %v376 = vpop.permute.xlu0 %375
    %v378 = vmul.f32 %v357, %v376
    %v380 = vrot.slane %v378, 6
    %381 = vrot.lane.b32.xlu0 %v380, 32
    %v382 = vpop.permute.xlu0 %381
    %v383 = vsel %vm170, %v382, 0
    %385 = vmatpush.msra.mxu0 0.0
    %386 = vmatpush.msra.mxu0 0.0
    %387 = vmatpush.msra.mxu0 0.0
    %388 = vmatpush.msra.mxu0 0.0
    %389 = vmatpush.msra.mxu0 0.0
    %390 = vmatpush.msra.mxu0 0.0
    %391 = vmatpush.msra.mxu0 0.0
    %392 = vmatpush.msra.mxu0 0.0
    %393 = vmatpush.msra.mxu0 0.0
    %394 = vmatpush.msra.mxu0 0.0
    %395 = vmatpush.msra.mxu0 0.0
    %396 = vmatpush.msra.mxu0 0.0
    %397 = vmatpush.msra.mxu0 %v99
    %398 = vmatpush.msra.mxu0 %v98
    %399 = vmatpush.msra.mxu0 %v97
    %400 = vmatpush.msra.mxu0 %v96
    %401 = vmatmul.f32.gmra.mxu0 %v383
    %v402 = vpop.f32.mrf.mxu0
    %v403 = vadd.f32 0.0, %v402
    %404 = vdwg.mxu0
    %v405 = vadd.f32 %v134, %v403
    %v406 = vxor.u32 %v405, 2147483648
    %v407 = vmul.f32 %v406, 1.442695
    %v408 = vpow.pop %v407
    %v409 = vadd.f32 %v408, 1.0
    %v410 = vrcp.pop %v409
    %v411 = vmul.f32 %v409, %v410
    %v412 = vsub.f32 1.0, %v411
    %v413 = vmul.f32 %v410, %v412
    %v414 = vadd.f32 %v410, %v413
    %vm415 = vweird.f32 %v409
    %vm416 = vweird.f32 %v410
    %vm417 = vmor %vm415, %vm416
    %v418 = vsel %vm417, %v410, %v414
    %v419 = vand.u32 2147483647, %v409
    %vm420 = vcmp.eq.f32.partialorder %v419, 8.507059e+37
    %v421 = vand.u32 %v409, 2147483648
    %v422 = vor.u32 1.1754944e-38, %v421
    %v423 = vsel %vm420, %v422, %v418
    %v424 = vmul.f32 1.0, %v423
    %v425 = vtanh.pop %v405
    %v427 = vrot.slane %v372, 6
    %v429 = vmul.f32 %v424, %v427
    %431 = vrot.lane.b32.xlu0 %v425, 64
    %v432 = vpop.permute.xlu0 %431
    %v434 = vmul.f32 %v424, %v432
    %436 = vrot.lane.b32.xlu0 %v434, 32
    %v437 = vpop.permute.xlu0 %436
    %v439 = vadd.f32 %v429, %v437
    %v440 = vtanh.pop %v439
    %442 = vrot.lane.b32.xlu0 %v440, 64
    %v443 = vpop.permute.xlu0 %442
    %v445 = vmul.f32 %v424, %v443
    %447 = vrot.lane.b32.xlu0 %v445, 32
    %v448 = vpop.permute.xlu0 %447
    %v449 = vsel %vm170, %v448, 0
    %451 = vmatpush.msra.mxu0 0.0
    %452 = vmatpush.msra.mxu0 0.0
    %453 = vmatpush.msra.mxu0 0.0
    %454 = vmatpush.msra.mxu0 0.0
    %455 = vmatpush.msra.mxu0 0.0
    %456 = vmatpush.msra.mxu0 0.0
    %457 = vmatpush.msra.mxu0 0.0
    %458 = vmatpush.msra.mxu0 0.0
    %459 = vmatpush.msra.mxu0 0.0
    %460 = vmatpush.msra.mxu0 0.0
    %461 = vmatpush.msra.mxu0 0.0
    %462 = vmatpush.msra.mxu0 0.0
    %463 = vmatpush.msra.mxu0 %v99
    %464 = vmatpush.msra.mxu0 %v98
    %465 = vmatpush.msra.mxu0 %v97
    %466 = vmatpush.msra.mxu0 %v96
    %467 = vmatmul.f32.gmra.mxu0 %v449
    %v468 = vpop.f32.mrf.mxu0
    %v469 = vadd.f32 0.0, %v468
    %470 = vdwg.mxu0
    %v472 = vrot.slane %v469, 6
    %v474 = vadd.f32 %v134, %v472
    %v475 = vxor.u32 %v474, 2147483648
    %v476 = vmul.f32 %v475, 1.442695
    %v477 = vpow.pop %v476
    %v478 = vadd.f32 %v477, 1.0
    %v479 = vrcp.pop %v478
    %v480 = vmul.f32 %v478, %v479
    %v481 = vsub.f32 1.0, %v480
    %v482 = vmul.f32 %v479, %v481
    %v483 = vadd.f32 %v479, %v482
    %vm484 = vweird.f32 %v478
    %vm485 = vweird.f32 %v479
    %vm486 = vmor %vm484, %vm485
    %v487 = vsel %vm486, %v479, %v483
    %v488 = vand.u32 2147483647, %v478
    %vm489 = vcmp.eq.f32.partialorder %v488, 8.507059e+37
    %v490 = vand.u32 %v478, 2147483648
    %v491 = vor.u32 1.1754944e-38, %v490
    %v492 = vsel %vm489, %v491, %v487
    %v493 = vmul.f32 1.0, %v492
    %v494 = vtanh.pop %v474
    %v496 = vrot.slane %v439, 6
    %v498 = vmul.f32 %v493, %v496
    %500 = vrot.lane.b32.xlu0 %v494, 64
    %v501 = vpop.permute.xlu0 %500
    %v503 = vmul.f32 %v493, %v501
    %505 = vrot.lane.b32.xlu0 %v503, 32
    %v506 = vpop.permute.xlu0 %505
    %v508 = vadd.f32 %v498, %v506
    %v509 = vtanh.pop %v508
    %511 = vrot.lane.b32.xlu0 %v509, 64
    %v512 = vpop.permute.xlu0 %511
    %v514 = vmul.f32 %v493, %v512
    %v516 = vrot.slane %v514, 2
    %517 = vrot.lane.b32.xlu0 %v516, 32
    %v518 = vpop.permute.xlu0 %517
    %v519 = vsel %vm170, %v518, 0
    %521 = vmatpush.msra.mxu0 0.0
    %522 = vmatpush.msra.mxu0 0.0
    %523 = vmatpush.msra.mxu0 0.0
    %524 = vmatpush.msra.mxu0 0.0
    %525 = vmatpush.msra.mxu0 0.0
    %526 = vmatpush.msra.mxu0 0.0
    %527 = vmatpush.msra.mxu0 0.0
    %528 = vmatpush.msra.mxu0 0.0
    %529 = vmatpush.msra.mxu0 0.0
    %530 = vmatpush.msra.mxu0 0.0
    %531 = vmatpush.msra.mxu0 0.0
    %532 = vmatpush.msra.mxu0 0.0
    %533 = vmatpush.msra.mxu0 %v99
    %534 = vmatpush.msra.mxu0 %v98
    %535 = vmatpush.msra.mxu0 %v97
    %536 = vmatpush.msra.mxu0 %v96
    %537 = vmatmul.f32.gmra.mxu0 %v519
    %v538 = vpop.f32.mrf.mxu0
    %v539 = vadd.f32 0.0, %v538
    %540 = vdwg.mxu0
    %v542 = vrot.slane %v539, 4
    %v544 = vadd.f32 %v134, %v542
    %v545 = vxor.u32 %v544, 2147483648
    %v546 = vmul.f32 %v545, 1.442695
    %v547 = vpow.pop %v546
    %v548 = vadd.f32 %v547, 1.0
    %v549 = vrcp.pop %v548
    %v550 = vmul.f32 %v548, %v549
    %v551 = vsub.f32 1.0, %v550
    %v552 = vmul.f32 %v549, %v551
    %v553 = vadd.f32 %v549, %v552
    %vm554 = vweird.f32 %v548
    %vm555 = vweird.f32 %v549
    %vm556 = vmor %vm554, %vm555
    %v557 = vsel %vm556, %v549, %v553
    %v558 = vand.u32 2147483647, %v548
    %vm559 = vcmp.eq.f32.partialorder %v558, 8.507059e+37
    %v560 = vand.u32 %v548, 2147483648
    %v561 = vor.u32 1.1754944e-38, %v560
    %v562 = vsel %vm559, %v561, %v557
    %v563 = vmul.f32 1.0, %v562
    %v564 = vtanh.pop %v544
    %v566 = vrot.slane %v508, 6
    %v568 = vmul.f32 %v563, %v566
    %570 = vrot.lane.b32.xlu0 %v564, 64
    %v571 = vpop.permute.xlu0 %570
    %v573 = vmul.f32 %v563, %v571
    %575 = vrot.lane.b32.xlu0 %v573, 32
    %v576 = vpop.permute.xlu0 %575
    %v578 = vadd.f32 %v568, %v576
    %v579 = vtanh.pop %v578
    %581 = vrot.lane.b32.xlu0 %v579, 64
    %v582 = vpop.permute.xlu0 %581
    %v584 = vmul.f32 %v563, %v582
    %v586 = vrot.slane %v584, 4
    %587 = vrot.lane.b32.xlu0 %v586, 32
    %v588 = vpop.permute.xlu0 %587
    %v589 = vsel %vm170, %v588, 0
    %591 = vmatpush.msra.mxu0 0.0
    %592 = vmatpush.msra.mxu0 0.0
    %593 = vmatpush.msra.mxu0 0.0
    %594 = vmatpush.msra.mxu0 0.0
    %595 = vmatpush.msra.mxu0 0.0
    %596 = vmatpush.msra.mxu0 0.0
    %597 = vmatpush.msra.mxu0 0.0
    %598 = vmatpush.msra.mxu0 0.0
    %599 = vmatpush.msra.mxu0 0.0
    %600 = vmatpush.msra.mxu0 0.0
    %601 = vmatpush.msra.mxu0 0.0
    %602 = vmatpush.msra.mxu0 0.0
    %603 = vmatpush.msra.mxu0 %v99
    %604 = vmatpush.msra.mxu0 %v98
    %605 = vmatpush.msra.mxu0 %v97
    %606 = vmatpush.msra.mxu0 %v96
    %607 = vmatmul.f32.gmra.mxu0 %v589
    %v608 = vpop.f32.mrf.mxu0
    %v609 = vadd.f32 0.0, %v608
    %610 = vdwg.mxu0
    %v612 = vrot.slane %v609, 2
    %v614 = vadd.f32 %v134, %v612
    %v615 = vxor.u32 %v614, 2147483648
    %v616 = vmul.f32 %v615, 1.442695
    %v617 = vpow.pop %v616
    %v618 = vadd.f32 %v617, 1.0
    %v619 = vrcp.pop %v618
    %v620 = vmul.f32 %v618, %v619
    %v621 = vsub.f32 1.0, %v620
    %v622 = vmul.f32 %v619, %v621
    %v623 = vadd.f32 %v619, %v622
    %vm624 = vweird.f32 %v618
    %vm625 = vweird.f32 %v619
    %vm626 = vmor %vm624, %vm625
    %v627 = vsel %vm626, %v619, %v623
    %v628 = vand.u32 2147483647, %v618
    %vm629 = vcmp.eq.f32.partialorder %v628, 8.507059e+37
    %v630 = vand.u32 %v618, 2147483648
    %v631 = vor.u32 1.1754944e-38, %v630
    %v632 = vsel %vm629, %v631, %v627
    %v633 = vmul.f32 1.0, %v632
    %v634 = vtanh.pop %v614
    %v636 = vrot.slane %v578, 6
    %v638 = vmul.f32 %v633, %v636
    %640 = vrot.lane.b32.xlu0 %v634, 64
    %v641 = vpop.permute.xlu0 %640
    %v643 = vmul.f32 %v633, %v641
    %645 = vrot.lane.b32.xlu0 %v643, 32
    %v646 = vpop.permute.xlu0 %645
    %v648 = vadd.f32 %v638, %v646
    %v649 = vtanh.pop %v648
    %651 = vrot.lane.b32.xlu0 %v649, 64
    %v652 = vpop.permute.xlu0 %651
    %v654 = vmul.f32 %v633, %v652
    %v655 = vld [vmem:[#allocation8] sm:$0xff]
    %v656 = vld [vmem:[#allocation8 + $0x8] sm:$0xff]
    %v657 = vld [vmem:[%s5] sm:$0x1]
    %v659 = vperm.slane %v657, 0
    %v661 = vrot.slane %v95, 6
    %v662 = vsel %vm106, %v661, 0
    %664 = vmatpush.msra.mxu0 0.0
    %665 = vmatpush.msra.mxu0 0.0
    %666 = vmatpush.msra.mxu0 0.0
    %667 = vmatpush.msra.mxu0 0.0
    %668 = vmatpush.msra.mxu0 0.0
    %669 = vmatpush.msra.mxu0 0.0
    %670 = vmatpush.msra.mxu0 0.0
    %671 = vmatpush.msra.mxu0 0.0
    %672 = vmatpush.msra.mxu0 0.0
    %673 = vmatpush.msra.mxu0 0.0
    %674 = vmatpush.msra.mxu0 0.0
    %675 = vmatpush.msra.mxu0 0.0
    %676 = vmatpush.msra.mxu0 0.0
    %677 = vmatpush.msra.mxu0 0.0
    %678 = vmatpush.msra.mxu0 %v656
    %679 = vmatpush.msra.mxu0 %v655
    %680 = vmatmul.f32.gmra.mxu0 %v662
    %v681 = vpop.f32.mrf.mxu0
    %v682 = vadd.f32 %v659, %v681
    %683 = vdwg.mxu0
    %v684 = vxor.u32 %v682, 2147483648
    %v685 = vmul.f32 %v684, 1.442695
    %v686 = vpow.pop %v685
    %v687 = vadd.f32 %v686, 1.0
    %v688 = vrcp.pop %v687
    %v689 = vmul.f32 %v687, %v688
    %v690 = vsub.f32 1.0, %v689
    %v691 = vmul.f32 %v688, %v690
    %v692 = vadd.f32 %v688, %v691
    %vm693 = vweird.f32 %v687
    %vm694 = vweird.f32 %v688
    %vm695 = vmor %vm693, %vm694
    %v696 = vsel %vm695, %v688, %v692
    %v697 = vand.u32 2147483647, %v687
    %vm698 = vcmp.eq.f32.partialorder %v697, 8.507059e+37
    %v699 = vand.u32 %v687, 2147483648
    %v700 = vor.u32 1.1754944e-38, %v699
    %v701 = vsel %vm698, %v700, %v696
    %v702 = vmul.f32 1.0, %v701
    %v703 = vtanh.pop %v682
    %705 = vrot.lane.b32.xlu0 %v703, 64
    %v706 = vpop.permute.xlu0 %705
    %v708 = vmul.f32 %v702, %v706
    %v709 = vtanh.pop %v708
    %711 = vrot.lane.b32.xlu0 %v709, 96
    %v712 = vpop.permute.xlu0 %711
    %v714 = vmul.f32 %v702, %v712
    %v715 = vld [vmem:[%s6] sm:$0x1]
    %v717 = vperm.slane %v715, 0
    %718 = vrot.lane.b32.xlu0 %v717, 96
    %v719 = vpop.permute.xlu0 %718
    %v721 = vmul.f32 %v654, %v719
    %723 = vrot.lane.b32.xlu0 %v721, 32
    %v724 = vpop.permute.xlu0 %723
    %vm726 = vcmask 261126
    %v727 = vsel %vm726, %v724, 0.0
    %728 = vadd.xlane.f32.xlu0 %v727
    %v729 = vpop.xlane.xlu0 %728
    %730 = vrot.lane.b32.xlu0 %v717, 64
    %v731 = vpop.permute.xlu0 %730
    %v733 = vmul.f32 %v714, %v731
    %735 = vrot.lane.b32.xlu0 %v733, 32
    %v736 = vpop.permute.xlu0 %735
    %vm738 = vcmask 254976
    %v739 = vsel %vm738, %v736, 0.0
    %740 = vadd.xlane.f32.xlu0 %v739
    %v741 = vpop.xlane.xlu0 %740
    %v743 = vrot.slane %v741, 2
    %v745 = vadd.f32 %v729, %v743
    %v746 = vld [vmem:[#allocation2] sm:$0x1]
    %v748 = vperm.slane %v746, 0
    %v750 = vadd.f32 %v745, %v748
    %vm751 = vcmask 7174
    %752 = vst.msk [vmem:[%s8 - $0x6] sm:$0xc0] %vm751, %v750
    // Predicated region
    $region50: #{tpu_custom_call.1} parent=1 // pred_check
      _
    $region51: #{tpu_custom_call.1} parent=1 // pred_check_branch
      %754 = sbr.rel (0) target = $region53
    $region52: #{tpu_custom_call.1} parent=1 // pred_region
      _
    $region53: #{tpu_custom_call.1} parent=1 // pred_fallthru
      _
    // Predicated region
    $region54: #{tpu_custom_call.1} parent=1 // pred_check
      _
    $region55: #{tpu_custom_call.1} parent=1 // pred_check_branch
      %756 = sbr.rel (0) target = $region57
    $region56: #{tpu_custom_call.1} parent=1 // pred_region
      _
    $region57: #{tpu_custom_call.1} parent=1 // pred_fallthru
      _
    %757 = vsyncpa [#allocation4], 1
    %758 = vsyncpa [#allocation6], 1
    %759 = vsyncpa [#allocation9], 1

</llo_original>
